<compile_context>
chip_gen: v7x
topology: tpu7x:2x2x1
jax: 0.10.0
libtpu: 0.0.40
codegen_flags: <defaults>
</compile_context>

<pallas_src>
import functools

import jax
import jax.numpy as jnp
from jax.experimental import pallas as pl
from jax.experimental.pallas import tpu as pltpu


def _entropy_sum_kernel(x_ref, acc_ref, *, eps, total, block_rows, lane,
                        acc_rows, tiles_per_split, needs_mask):
    """Accumulate sum(x * log(x + eps)) into a per-split VMEM vector accumulator."""
    c = pl.program_id(0)   # split / core index ("parallel")
    i = pl.program_id(1)   # tile index within the split ("arbitrary")

    @pl.when(i == 0)
    def _init():
        acc_ref[...] = jnp.zeros_like(acc_ref)

    x = x_ref[...].astype(jnp.float32)           # single upcast per tile
    term = x * jnp.log(x + jnp.float32(eps))     # EUP log + VPU mul

    if needs_mask:
        # Zero out padded / out-of-range elements (ragged last tile, or the
        # clamped overshoot tile of an uneven split). Exact even for eps == 0.
        # Note: flat indices use int32 (fine for < 2^31 elements).
        b = c * tiles_per_split + i              # un-clamped global tile index
        row = jax.lax.broadcasted_iota(jnp.int32, (block_rows, lane), 0)
        col = jax.lax.broadcasted_iota(jnp.int32, (block_rows, lane), 1)
        flat_idx = (b * block_rows + row) * lane + col
        term = jnp.where(flat_idx < total, term, 0.0)

    # Reduce the tile onto the (acc_rows, lane) accumulator using only
    # vreg-wise VPU adds (no cross-lane / cross-sublane movement here).
    groups = block_rows // acc_rows
    partial = term.reshape(groups, acc_rows, lane).sum(axis=0)
    acc_ref[...] += partial.reshape(1, acc_rows, lane)


def entropy_loss_encap(x, eps=1e-12, *, block_bytes=4 * 1024 * 1024,
                       num_splits=2):
    """Pallas implementation of EntropyLossEncap.forward (returns a scalar)."""
    if x.ndim < 2:
        raise ValueError("wrong feature map size")
    channels = x.shape[1]
    total = x.size
    rows = total // channels                     # N * prod(spatial)

    flat = x.reshape(-1)                         # free: sum is layout-invariant

    # Lane-dense 2-D view (R, lane); lane a multiple of 128 (prefer 1024).
    lane = next((l for l in (1024, 512, 256, 128) if total % l == 0), 1024)
    pad = (-total) % lane
    if pad:
        # Rare (total not a multiple of 128); pads < lane elements of the
        # flat tail (no transpose, and only triggers when unavoidable).
        flat = jnp.pad(flat, (0, pad))
    num_rows_2d = (total + pad) // lane
    mat = flat.reshape(num_rows_2d, lane)

    # ~block_bytes per streamed buffer (x2 double buffering) fits the scoped
    # VMEM defaults on v5e / v6e / v7x.
    elem_bytes = jnp.dtype(x.dtype).itemsize
    max_block_rows = max(8, ((block_bytes // (elem_bytes * lane)) // 8) * 8)
    if num_rows_2d < 8:
        block_rows = num_rows_2d                 # tiny input: full extent
    else:
        block_rows = min(max_block_rows, (num_rows_2d // 8) * 8)
    num_tiles = pl.cdiv(num_rows_2d, block_rows)
    tiles_per_split = pl.cdiv(num_tiles, num_splits)
    acc_rows = 8 if block_rows % 8 == 0 else block_rows
    needs_mask = (pad != 0
                  or num_rows_2d % block_rows != 0
                  or tiles_per_split * num_splits != num_tiles)

    kernel = functools.partial(
        _entropy_sum_kernel, eps=float(eps), total=total,
        block_rows=block_rows, lane=lane, acc_rows=acc_rows,
        tiles_per_split=tiles_per_split, needs_mask=needs_mask)

    def in_index_map(c, i):
        # Clamp so the overshoot tile of an uneven split never DMAs past the
        # array; its contribution is masked to zero inside the kernel.
        return (jnp.minimum(c * tiles_per_split + i, num_tiles - 1), 0)

    partials = pl.pallas_call(
        kernel,
        out_shape=jax.ShapeDtypeStruct((num_splits, acc_rows, lane),
                                       jnp.float32),
        grid_spec=pltpu.PrefetchScalarGridSpec(
            num_scalar_prefetch=0,
            grid=(num_splits, tiles_per_split),
            in_specs=[pl.BlockSpec((block_rows, lane), in_index_map)],
            out_specs=pl.BlockSpec((1, acc_rows, lane),
                                   lambda c, i: (c, 0, 0)),
        ),
        compiler_params=pltpu.CompilerParams(
            dimension_semantics=("parallel", "arbitrary")),
    )(mat)

    # Single tiny cross-lane reduce + normalize + negate (wrapper side).
    return -jnp.sum(partials) / jnp.float32(rows)


# ----------------------- pure-JAX reference (spec) -------------------------

def _feature_map_permute(x):
    ndim = x.ndim
    c = x.shape[1]
    if ndim == 2:
        y = x
    elif ndim == 3:
        y = jnp.transpose(x, (0, 2, 1))
    elif ndim == 4:
        y = jnp.transpose(x, (0, 2, 3, 1))
    elif ndim == 5:
        y = jnp.transpose(x, (0, 2, 3, 4, 1))
    else:
        raise ValueError("wrong feature map size")
    return y.reshape(-1, c)


def _reference_entropy_loss_encap(x, eps=1e-12):
    score = _feature_map_permute(x).astype(jnp.float32)
    b = score * jnp.log(score + eps)
    b = -1.0 * jnp.sum(b, axis=1)
    return jnp.mean(b)


if __name__ == "__main__":
    key = jax.random.PRNGKey(0)
    k1, k2 = jax.random.split(key)

    # Case 1: NCHW score map, normalized over channels (like the module sees).
    x1 = jax.random.uniform(k1, (2, 4, 16, 16), dtype=jnp.float32,
                            minval=0.0, maxval=1.0)
    x1 = x1 / jnp.sum(x1, axis=1, keepdims=True)
    loss1 = jax.block_until_ready(entropy_loss_encap(x1, eps=1e-12))
    ref1 = _reference_entropy_loss_encap(x1, eps=1e-12)
    assert jnp.allclose(loss1, ref1, rtol=1e-5, atol=1e-5), (loss1, ref1)

    # Case 2: ragged total (exercises the in-kernel mask / tail handling).
    x2 = jax.random.uniform(k2, (2, 3, 7, 5), dtype=jnp.float32,
                            minval=0.0, maxval=1.0)
    loss2 = jax.block_until_ready(entropy_loss_encap(x2, eps=1e-12))
    ref2 = _reference_entropy_loss_encap(x2, eps=1e-12)
    assert jnp.allclose(loss2, ref2, rtol=1e-5, atol=1e-5), (loss2, ref2)

    print("KERNEL_OK")
</pallas_src>

<mosaic_0001>
module attributes {stable_mosaic.version = 11 : i64} {
  func.func @_entropy_sum_kernel(%arg0: i32, %arg1: i32, %arg2: memref<2x1024xf32, #tpu.memory_space<vmem>>, %arg3: memref<1x2x1024xf32, #tpu.memory_space<vmem>>) attributes {dimension_semantics = [#tpu.dimension_semantics<parallel>, #tpu.dimension_semantics<arbitrary>], iteration_bounds = array<i64: 2, 1>, scalar_prefetch = 0 : i64, scratch_operands = 0 : i64, tpu.core_type = #tpu.core_type<tc>, window_params = [{transform_indices = @transform_0, window_bounds = array<i64: 2, 1024>}, {transform_indices = @transform_1, window_bounds = array<i64: 1, 2, 1024>}]} {
    %c0_i32 = arith.constant 0 : i32
    %0 = arith.cmpi eq, %arg1, %c0_i32 : i32
    %1 = arith.extui %0 : i1 to i32
    %c0_i32_0 = arith.constant 0 : i32
    %2 = arith.cmpi ne, %1, %c0_i32_0 : i32
    scf.if %2 {
      %cst_10 = arith.constant 0.000000e+00 : f32
      %28 = vector.broadcast %cst_10 : f32 to vector<1x2x1024xf32>
      %c0_11 = arith.constant 0 : index
      %c0_12 = arith.constant 0 : index
      %c0_13 = arith.constant 0 : index
      %29 = vector.load %arg3[%c0_11, %c0_12, %c0_13] : memref<1x2x1024xf32, #tpu.memory_space<vmem>>, vector<1x2x1024xf32>
      tpu.vector_store %arg3[%c0_11, %c0_12, %c0_13], %28 {strides = array<i32>} : memref<1x2x1024xf32, #tpu.memory_space<vmem>>, vector<1x2x1024xf32>,
    } else {
    }
    %c0 = arith.constant 0 : index
    %c0_1 = arith.constant 0 : index
    %3 = vector.load %arg2[%c0, %c0_1] : memref<2x1024xf32, #tpu.memory_space<vmem>>, vector<2x1024xf32>
    %cst = arith.constant 9.99999996E-13 : f32
    %4 = vector.broadcast %cst : f32 to vector<2x1024xf32>
    %5 = arith.addf %3, %4 : vector<2x1024xf32>
    %6 = math.log %5 : vector<2x1024xf32>
    %7 = arith.mulf %3, %6 : vector<2x1024xf32>
    %c1_i32 = arith.constant 1 : i32
    %8 = arith.muli %arg0, %c1_i32 : i32
    %9 = arith.addi %8, %arg1 : i32
    %10 = tpu.iota {dimensions = array<i32: 0>} : vector<2x1024xi32>
    %11 = tpu.iota {dimensions = array<i32: 1>} : vector<2x1024xi32>
    %c2_i32 = arith.constant 2 : i32
    %12 = arith.muli %9, %c2_i32 : i32
    %13 = vector.broadcast %12 : i32 to vector<2x1024xi32>
    %14 = arith.addi %13, %10 : vector<2x1024xi32>
    %c1024_i32 = arith.constant 1024 : i32
    %15 = vector.broadcast %c1024_i32 : i32 to vector<2x1024xi32>
    %16 = arith.muli %14, %15 : vector<2x1024xi32>
    %17 = arith.addi %16, %11 : vector<2x1024xi32>
    %c2048_i32 = arith.constant 2048 : i32
    %18 = vector.broadcast %c2048_i32 : i32 to vector<2x1024xi32>
    %19 = arith.cmpi slt, %17, %18 : vector<2x1024xi32>
    %cst_2 = arith.constant 0.000000e+00 : f32
    %20 = vector.broadcast %cst_2 : f32 to vector<2x1024xf32>
    %21 = arith.select %19, %7, %20 : vector<2x1024xi1>, vector<2x1024xf32>
    %22 = vector.shape_cast %21 : vector<2x1024xf32> to vector<1x2x1024xf32>
    %cst_3 = arith.constant dense<0.000000e+00> : vector<2x1024xf32>
    %23 = vector.multi_reduction <add>, %22, %cst_3 [0] : vector<1x2x1024xf32> to vector<2x1024xf32>
    %c0_4 = arith.constant 0 : index
    %c0_5 = arith.constant 0 : index
    %c0_6 = arith.constant 0 : index
    %24 = vector.load %arg3[%c0_4, %c0_5, %c0_6] : memref<1x2x1024xf32, #tpu.memory_space<vmem>>, vector<1x2x1024xf32>
    %25 = vector.shape_cast %23 : vector<2x1024xf32> to vector<1x2x1024xf32>
    %26 = arith.addf %24, %25 : vector<1x2x1024xf32>
    %c0_7 = arith.constant 0 : index
    %c0_8 = arith.constant 0 : index
    %c0_9 = arith.constant 0 : index
    %27 = vector.load %arg3[%c0_7, %c0_8, %c0_9] : memref<1x2x1024xf32, #tpu.memory_space<vmem>>, vector<1x2x1024xf32>
    tpu.vector_store %arg3[%c0_7, %c0_8, %c0_9], %26 {strides = array<i32>} : memref<1x2x1024xf32, #tpu.memory_space<vmem>>, vector<1x2x1024xf32>,
    return
  }
  func.func @transform_0(%arg0: i32, %arg1: i32) -> (i32, i32) {
    %c1_i32 = arith.constant 1 : i32
    %0 = arith.muli %arg0, %c1_i32 : i32
    %1 = arith.addi %0, %arg1 : i32
    %c0_i32 = arith.constant 0 : i32
    %2 = arith.minsi %1, %c0_i32 : i32
    %c0_i32_0 = arith.constant 0 : i32
    %c0_i32_1 = arith.constant 0 : i32
    return %2, %c0_i32_0 : i32, i32
  }
  func.func @transform_1(%arg0: i32, %arg1: i32) -> (i32, i32, i32) {
    %c0_i32 = arith.constant 0 : i32
    %c0_i32_0 = arith.constant 0 : i32
    %c0_i32_1 = arith.constant 0 : i32
    return %arg0, %c0_i32, %c0_i32_0 : i32, i32, i32
  }
}

</mosaic_0001>

<llo_original>
// kernel: tpu_custom_call.1
$region0: #{tpu_custom_call.1}
  #allocation0 [shape = 'u32[]', space=smem, size = 0x4, offset = 0x4, fixed_abs, tag = 'smem constant byte address 0x4 - core index']
  #allocation1 [shape = 'u32[144,128]{1,0:T(1,128)}', space=vmem, size = 0x12000, scoped, tag = 'internal scratch']
  %s0 = inlined_call_operand.hbm [shape: f32[2,1024], index: 0, kind: input, shape index: {}]
  %s1 = inlined_call_operand.hbm [shape: f32[2,2,1024], index: 1, kind: output, shape index: {}]
  %s2 = sld [smem:[#allocation0]]
  $region45: #{tpu_custom_call.1} parent=0
    _
  %s4 = ssub.s32 1, %s2
  %s5 = scalar_select 0, %s4, %s2
  $region1: #{tpu_custom_call.1} parent=0
    #allocation2 [shape = 'u8[16384]{0}', space=vmem, size = 0x4000, scoped, tag = 'input window, operand 0']
    #allocation3 [shape = 's32[2]{0}', space=sflag, size = 0x8, scoped, tag = 'scoped memory for tpu_custom_call.1']
    #allocation4 [shape = 's32[2]{0}', space=sflag, size = 0x8, scoped, tag = 'scoped memory for tpu_custom_call.1']
    #allocation5 [shape = 'u8[16384]{0}', space=vmem, size = 0x4000, scoped, tag = 'output window, operand 0']
    %6 = vsyncpa [#allocation3], 0
    %s7 = scalar_lea.sflag [#allocation3], 1
    %8 = vsyncpa %s7, 0
    %9 = vsyncpa [#allocation4], 0
    %s10 = scalar_lea.sflag [#allocation4], 1
    %11 = vsyncpa %s10, 0
    loop: start=0, step=1, limit=4
    $region2: #{tpu_custom_call.1} parent=1 // loop_pre_header
      _
    $region3: #{tpu_custom_call.1} parent=1 // loop_header
      %s13 = sphi 0, %s17
      %p14 = scmp.ge.s32.totalorder %s13, 4
      %s20 = sphi 0, %s32
      %s21 = sphi 0, %s28
      %s22 = sphi 0, %s20
      %s23 = sphi 0, %s21
      %s24 = sphi 0, %s22
      %s25 = sphi 0, %s23
      %s41 = sphi 0, %s43
      %s44 = sphi 0, %s41
      %s45 = sphi 0, %s44
      %s61 = sphi 0, %s45
      %s67 = sphi 0, %s69
      %s70 = sphi 0, %s67
      %s71 = sphi 0, %s70
      %s87 = sphi 0, %s71
    $region4: #{tpu_custom_call.1} parent=1 // loop_header_branch
      %16 = sbr.rel (%p14) target = $region8
    $region5: #{tpu_custom_call.1} parent=1 // loop_body
      %s18 = ssub.s32 %s13, 1
      %s19 = ssub.s32 %s13, 2
      %s26 = sadd.s32 1, %s21
      %p27 = scmp.ge.s32.totalorder %s26, 1
      %s28 = scalar_select %p27, 0, %s26
      %s29 = sadd.s32 1, %s20
      %s30 = scalar_select %p27, %s29, %s20
      %p31 = scmp.ge.s32.totalorder %s30, 2
      %s32 = scalar_select %p31, 0, %s30
      %s33 = sadd.s32 %s20, %s21
      %p34 = scmp.lt.s32.totalorder %s33, 0
      %s35 = scalar_select %p34, %s33, 0
      %s36 = sadd.s32 %s32, %s28
      %p37 = scmp.lt.s32.totalorder %s36, 0
      %s38 = scalar_select %p37, %s36, 0
      %s39 = ssub.s32 %s35, %s38
      %p40 = scmp.eq.s32.totalorder %s39, 0
      %s42 = sadd.s32 %s41, 1
      %s43 = scalar_select %p40, %s41, %s42
      %p46 = pneg %p40
      %p47 = scmp.eq.s32.totalorder %s13, 1
      %p48 = por %p46, %p47
      %p49 = scmp.ne.s32.totalorder %s41, %s44
      %p50 = scmp.eq.s32.totalorder %s13, 0
      %p51 = por %p49, %p50
      %p52 = scmp.ne.s32.totalorder %s41, %s44
      %p53 = scmp.eq.s32.totalorder %s18, 1
      %p54 = por %p52, %p53
      %p55 = scmp.ne.s32.totalorder %s44, %s45
      %p56 = scmp.eq.s32.totalorder %s18, 0
      %p57 = por %p55, %p56
      %p58 = scmp.ne.s32.totalorder %s44, %s45
      %p59 = scmp.eq.s32.totalorder %s19, 1
      %p60 = por %p58, %p59
      %p62 = scmp.ne.s32.totalorder %s45, %s61
      %p63 = scmp.eq.s32.totalorder %s19, 0
      %p64 = por %p62, %p63
      %s65 = ssub.s32 %s20, %s32
      %p66 = scmp.eq.s32.totalorder %s65, 0
      %s68 = sadd.s32 %s67, 1
      %s69 = scalar_select %p66, %s67, %s68
      %p72 = pneg %p66
      %p73 = scmp.eq.s32.totalorder %s13, 1
      %p74 = por %p72, %p73
      %p75 = scmp.ne.s32.totalorder %s67, %s70
      %p76 = scmp.eq.s32.totalorder %s13, 0
      %p77 = por %p75, %p76
      %p78 = scmp.ne.s32.totalorder %s67, %s70
      %p79 = scmp.eq.s32.totalorder %s18, 1
      %p80 = por %p78, %p79
      %p81 = scmp.ne.s32.totalorder %s70, %s71
      %p82 = scmp.eq.s32.totalorder %s18, 0
      %p83 = por %p81, %p82
      %p84 = scmp.ne.s32.totalorder %s70, %s71
      %p85 = scmp.eq.s32.totalorder %s19, 1
      %p86 = por %p84, %p85
      %p88 = scmp.ne.s32.totalorder %s71, %s87
      %p89 = scmp.eq.s32.totalorder %s19, 0
      %p90 = por %p88, %p89
      %p91 = scmp.le.s32.totalorder 1, %s13
      %p92 = scmp.lt.s32.totalorder %s13, 3
      %p93 = pnand %p91, %p92
      %p94 = pneg %p93
      // Predicated region
      $region9: #{tpu_custom_call.1} parent=5 // pred_check
        _
      $region10: #{tpu_custom_call.1} parent=5 // pred_check_branch
        %96 = sbr.rel (%p93) target = $region12
      $region11: #{tpu_custom_call.1} parent=5 // pred_region
        %s97 = ssub.s32 %s13, 1
      $region12: #{tpu_custom_call.1} parent=5 // pred_fallthru
        _
      %p98 = scmp.lt.s32.totalorder %s13, 2
      // Predicated region
      $region13: #{tpu_custom_call.1} parent=5 // pred_check
        %p99 = pneg %p98
      $region14: #{tpu_custom_call.1} parent=5 // pred_check_branch
        %101 = sbr.rel (%p99) target = $region16
      $region15: #{tpu_custom_call.1} parent=5 // pred_region
        // Predicated region
        $region17: #{tpu_custom_call.1} parent=15 // pred_check
          %p102 = pneg %p51
        $region18: #{tpu_custom_call.1} parent=15 // pred_check_branch
          %104 = sbr.rel (%p102) target = $region20
        $region19: #{tpu_custom_call.1} parent=15 // pred_region
          %s105 = sand.u32 %s41, 1
          %s106 = scalar_lea.sflag [#allocation3], %s105
          %s107 = sand.u32 %s41, 1
          %s108 = smul.addr %s107, 16
          %s109 = scalar_lea.vmem [#allocation2], %s108
          %s110 = sadd.s32 %s20, %s21
          %p111 = scmp.lt.s32.totalorder %s110, 0
          %s112 = scalar_select %p111, %s110, 0
          %s114 = ssub.s32 256, 256
          %115 = vsyncadd %s106, %s114
          %s116 = smul.addr %s112, 8
          %s117 = smul.addr %s116, 32
          %s118 = scalar_lea.hbm %s0, %s117
          %s120 = sshll.u32 %s109, 4
          %s121 = int_to_ptr.vmem [resolvable:$true] %s120
          %123 = dma.hbm_to_vmem [thread:$0]  %s118, 256, %s121, %s106
        $region20: #{tpu_custom_call.1} parent=15 // pred_fallthru
          _
      $region16: #{tpu_custom_call.1} parent=5 // pred_fallthru
        _
      %p124 = scmp.le.s32.totalorder 1, %s13
      %p125 = scmp.lt.s32.totalorder %s13, 3
      %p126 = pnand %p124, %p125
      %p127 = pneg %p126
      // Predicated region
      $region21: #{tpu_custom_call.1} parent=5 // pred_check
        _
      $region22: #{tpu_custom_call.1} parent=5 // pred_check_branch
        %129 = sbr.rel (%p126) target = $region24
      $region23: #{tpu_custom_call.1} parent=5 // pred_region
        %s130 = ssub.s32 %s13, 1
        %s131 = sand.u32 %s44, 1
        %s132 = scalar_lea.sflag [#allocation3], %s131
        %s133 = sand.u32 %s44, 1
        %s134 = smul.addr %s133, 16
        %s135 = scalar_lea.vmem [#allocation2], %s134
        // Predicated region
        $region25: #{tpu_custom_call.1} parent=23 // pred_check
          %p136 = pneg %p57
        $region26: #{tpu_custom_call.1} parent=23 // pred_check_branch
          %138 = sbr.rel (%p136) target = $region28
        $region27: #{tpu_custom_call.1} parent=23 // pred_region
          %139 = dma.done %s132, 256
        $region28: #{tpu_custom_call.1} parent=23 // pred_fallthru
          _
        %s140 = sand.u32 %s44, 1
        %s141 = scalar_lea.sflag [#allocation3], %s140
        %s142 = sand.u32 %s44, 1
        %s143 = smul.addr %s142, 16
        %s144 = scalar_lea.vmem [#allocation2], %s143
        %p145 = pneg %p57
        %p146 = pneg %p54
        %p147 = pneg %p83
        %p148 = pneg %p80
        %s149 = sand.u32 %s70, 1
        %s150 = scalar_lea.sflag [#allocation4], %s149
        %s151 = sand.u32 %s70, 1
        %s152 = smul.addr %s151, 16
        %s153 = scalar_lea.vmem [#allocation5], %s152
        %s154 = sadd.s32 %s22, %s23
        %p155 = scmp.lt.s32.totalorder %s154, 0
        %s156 = scalar_select %p155, %s154, 0
        %p157 = scmp.eq.s32.totalorder %s23, 0
        // Predicated region
        $region29: #{tpu_custom_call.1} parent=23 // pred_check
          %p158 = pneg %p157
        $region30: #{tpu_custom_call.1} parent=23 // pred_check_branch
          %160 = sbr.rel (%p158) target = $region32
        $region31: #{tpu_custom_call.1} parent=23 // pred_region
          %161 = vst [vmem:[%s153] sm:$0xff] 0.0
          %162 = vst [vmem:[%s153 + $0x8] sm:$0xff] 0.0
        $region32: #{tpu_custom_call.1} parent=23 // pred_fallthru
          _
        %v163 = vld [vmem:[%s135] sm:$0xff]
        %v164 = vld [vmem:[%s135 + $0x8] sm:$0xff]
        %v165 = vadd.f32 %v163, 1e-12
        %v166 = vadd.f32 %v164, 1e-12
        %v167 = vlog2.pop %v165
        %v168 = vmul.f32 %v167, 0.6931472
        %v169 = vlog2.pop %v166
        %v170 = vmul.f32 %v169, 0.6931472
        %v171 = vmul.f32 %v163, %v168
        %v172 = vmul.f32 %v164, %v170
        %s173 = sadd.s32 %s22, %s23
        %v174 = vlaneseq
        %v175 = vshrl.u32 %v174, 7
        %v176 = vlaneseq
        %v177 = vand.u32 %v176, 127
        %v178 = vadd.s32 %v177, 128
        %v179 = vadd.s32 %v177, 256
        %v180 = vadd.s32 %v177, 384
        %v181 = vadd.s32 %v177, 512
        %v182 = vadd.s32 %v177, 640
        %v183 = vadd.s32 %v177, 768
        %v184 = vadd.s32 %v177, 896
        %s185 = smul.u32 %s173, 2
        %v186 = vstv %s185
        %v187 = vadd.s32 %v186, %v175
        %v188 = vmul.u32 %v187, 1024
        %v189 = vadd.s32 %v188, %v177
        %v190 = vadd.s32 %v188, %v178
        %v191 = vadd.s32 %v188, %v179
        %v192 = vadd.s32 %v188, %v180
        %v193 = vadd.s32 %v188, %v181
        %v194 = vadd.s32 %v188, %v182
        %v195 = vadd.s32 %v188, %v183
        %v196 = vadd.s32 %v188, %v184
        %vm197 = vcmp.lt.s32.totalorder %v189, 2048
        %vm198 = vcmp.lt.s32.totalorder %v190, 2048
        %vm199 = vcmp.lt.s32.totalorder %v191, 2048
        %vm200 = vcmp.lt.s32.totalorder %v192, 2048
        %vm201 = vcmp.lt.s32.totalorder %v193, 2048
        %vm202 = vcmp.lt.s32.totalorder %v194, 2048
        %vm203 = vcmp.lt.s32.totalorder %v195, 2048
        %vm204 = vcmp.lt.s32.totalorder %v196, 2048
        %v207 = vcombine.high %v171, %v171
        %v209 = vunpack.c.l.s4 1983009808
        %v210 = vunpack.c.0.s8 %v209
        %v211 = vlaneseq
        %v212 = vshrl.u32 %v211, 7
        %v213 = vsub.s32 %v210, %v212
        %v214 = vrot.slane %v171, %v213
        %v216 = vunpack.c.l.s4 1983009808
        %v217 = vunpack.c.0.s8 %v216
        %v218 = vlaneseq
        %v219 = vshrl.u32 %v218, 7
        %v220 = vsub.s32 %v217, %v219
        %v221 = vrot.slane %v207, %v220
        %v222 = vcombine.high %v214, %v214
        %v223 = vcombine.high %v221, %v221
        %v224 = vcombine.high %v172, %v172
        %v226 = vunpack.c.l.s4 1983009808
        %v227 = vunpack.c.0.s8 %v226
        %v228 = vlaneseq
        %v229 = vshrl.u32 %v228, 7
        %v230 = vsub.s32 %v227, %v229
        %v231 = vrot.slane %v172, %v230
        %v233 = vunpack.c.l.s4 1983009808
        %v234 = vunpack.c.0.s8 %v233
        %v235 = vlaneseq
        %v236 = vshrl.u32 %v235, 7
        %v237 = vsub.s32 %v234, %v236
        %v238 = vrot.slane %v224, %v237
        %v239 = vcombine.high %v231, %v231
        %v240 = vcombine.high %v238, %v238
        %v249 = vsel %vm197, %v214, 0.0
        %v250 = vsel %vm198, %v222, 0.0
        %v251 = vsel %vm199, %v221, 0.0
        %v252 = vsel %vm200, %v223, 0.0
        %v253 = vsel %vm201, %v231, 0.0
        %v254 = vsel %vm202, %v239, 0.0
        %v255 = vsel %vm203, %v238, 0.0
        %v256 = vsel %vm204, %v240, 0.0
        %v257 = vadd.f32 %v249, 0.0
        %v258 = vadd.f32 %v250, 0.0
        %v259 = vadd.f32 %v251, 0.0
        %v260 = vadd.f32 %v252, 0.0
        %v261 = vadd.f32 %v253, 0.0
        %v262 = vadd.f32 %v254, 0.0
        %v263 = vadd.f32 %v255, 0.0
        %v264 = vadd.f32 %v256, 0.0
        %v265 = vld [vmem:[%s153] sm:$0xff]
        %v266 = vld [vmem:[%s153 + $0x8] sm:$0xff]
        %v275 = vcombine.low %v257, %v258
        %v276 = vcombine.low %v259, %v260
        %v278 = vunpack.c.l.s4 1983009808
        %v279 = vunpack.c.0.s8 %v278
        %v280 = vlaneseq
        %v281 = vshrl.u32 %v280, 7
        %v282 = vsub.s32 %v279, %v281
        %v283 = vrot.slane %v275, %v282
        %v285 = vunpack.c.l.s4 1983009808
        %v286 = vunpack.c.0.s8 %v285
        %v287 = vlaneseq
        %v288 = vshrl.u32 %v287, 7
        %v289 = vsub.s32 %v286, %v288
        %v290 = vrot.slane %v276, %v289
        %v291 = vcombine.low %v283, %v290
        %v292 = vcombine.low %v261, %v262
        %v293 = vcombine.low %v263, %v264
        %v295 = vunpack.c.l.s4 1983009808
        %v296 = vunpack.c.0.s8 %v295
        %v297 = vlaneseq
        %v298 = vshrl.u32 %v297, 7
        %v299 = vsub.s32 %v296, %v298
        %v300 = vrot.slane %v292, %v299
        %v302 = vunpack.c.l.s4 1983009808
        %v303 = vunpack.c.0.s8 %v302
        %v304 = vlaneseq
        %v305 = vshrl.u32 %v304, 7
        %v306 = vsub.s32 %v303, %v305
        %v307 = vrot.slane %v293, %v306
        %v308 = vcombine.low %v300, %v307
        %v311 = vadd.f32 %v265, %v291
        %v312 = vadd.f32 %v266, %v308
        %313 = vst [vmem:[%s153] sm:$0xff] %v311
        %314 = vst [vmem:[%s153 + $0x8] sm:$0xff] %v312
        %s315 = sand.u32 %s70, 1
        %s316 = scalar_lea.sflag [#allocation4], %s315
        %s317 = sand.u32 %s70, 1
        %s318 = smul.addr %s317, 16
        %s319 = scalar_lea.vmem [#allocation5], %s318
        // Predicated region
        $region33: #{tpu_custom_call.1} parent=23 // pred_check
          %p320 = pneg %p80
        $region34: #{tpu_custom_call.1} parent=23 // pred_check_branch
          %322 = sbr.rel (%p320) target = $region36
        $region35: #{tpu_custom_call.1} parent=23 // pred_region
          %s324 = ssub.s32 256, 256
          %325 = vsyncadd %s316, %s324
          %s326 = smul.addr %s22, 8
          %s327 = smul.addr %s326, 32
          %s328 = scalar_lea.hbm %s1, %s327
          %s330 = sshll.u32 %s319, 4
          %s331 = int_to_ptr.vmem [resolvable:$true] %s330
          %333 = dma.vmem_to_hbm [thread:$0]  %s331, 256, %s328, %s316
        $region36: #{tpu_custom_call.1} parent=23 // pred_fallthru
          _
      $region24: #{tpu_custom_call.1} parent=5 // pred_fallthru
        _
      %p334 = scmp.le.s32.totalorder 2, %s13
      // Predicated region
      $region37: #{tpu_custom_call.1} parent=5 // pred_check
        %p335 = pneg %p334
      $region38: #{tpu_custom_call.1} parent=5 // pred_check_branch
        %337 = sbr.rel (%p335) target = $region40
      $region39: #{tpu_custom_call.1} parent=5 // pred_region
        %s338 = ssub.s32 %s13, 2
        // Predicated region
        $region41: #{tpu_custom_call.1} parent=39 // pred_check
          %p339 = pneg %p86
        $region42: #{tpu_custom_call.1} parent=39 // pred_check_branch
          %341 = sbr.rel (%p339) target = $region44
        $region43: #{tpu_custom_call.1} parent=39 // pred_region
          %s342 = sand.u32 %s71, 1
          %s343 = scalar_lea.sflag [#allocation4], %s342
          %s344 = sand.u32 %s71, 1
          %s345 = smul.addr %s344, 16
          %s346 = scalar_lea.vmem [#allocation5], %s345
          %347 = dma.done %s343, 256
        $region44: #{tpu_custom_call.1} parent=39 // pred_fallthru
          _
      $region40: #{tpu_custom_call.1} parent=5 // pred_fallthru
        _
    $region6: #{tpu_custom_call.1} parent=1 // loop_footer
      %s17 = sadd.s32 1, %s13
    $region7: #{tpu_custom_call.1} parent=1 // loop_footer_branch
      %12 = sbr.rel target = $region3
    $region8: #{tpu_custom_call.1} parent=1 // loop_exit
      _
    %348 = vsyncpa [#allocation3], 1
    %s349 = scalar_lea.sflag [#allocation3], 1
    %350 = vsyncpa %s349, 1
    %351 = vsyncpa [#allocation4], 1
    %s352 = scalar_lea.sflag [#allocation4], 1
    %353 = vsyncpa %s352, 1

</llo_original>
